<compile_context>
chip_gen: v6e
topology: v6e:2x2x1
jax: 0.10.0
libtpu: 0.0.40
codegen_flags: <defaults>
</compile_context>

<pallas_src>
import functools

import jax
import jax.numpy as jnp
from jax.experimental import pallas as pl
from jax.experimental.pallas import tpu as pltpu


# v7x-safe VMEM accounting (constants are <= 64 MiB/TC with headroom).
_STREAM_BUDGET_BYTES = 24 * 1024 * 1024   # 2x double-buffer * (3 inputs + 1 output)
_VMEM_LIMIT_BYTES = 40 * 1024 * 1024
_TARGET_BLOCK_BYTES = 2 * 1024 * 1024     # per-array block target (~85%+ of roofline)
_MAX_BT = 8                               # cap on per-step batch unroll


def _gate_mlp(s0, s2, s4, w1a_ref, w1b_ref, w1c_ref, b1_ref,
              w2_ref, b2_ref, w3_ref, b3_ref):
    """Tiny squeeze-excite MLP on (C,1) pooled sums -> (3C,1) sigmoid gate (f32).

    1/HW (mean) normalization is folded into w1a/w1b/w1c by the wrapper.
    """
    h = (jnp.dot(w1a_ref[...], s0, preferred_element_type=jnp.float32)
         + jnp.dot(w1b_ref[...], s2, preferred_element_type=jnp.float32)
         + jnp.dot(w1c_ref[...], s4, preferred_element_type=jnp.float32)
         + b1_ref[...])
    h = jnp.maximum(h, 0.0)
    h = jnp.maximum(jnp.dot(w2_ref[...], h, preferred_element_type=jnp.float32)
                    + b2_ref[...], 0.0)
    e = jax.nn.sigmoid(jnp.dot(w3_ref[...], h, preferred_element_type=jnp.float32)
                       + b3_ref[...])
    return e                                             # (3C, 1) float32


def csaf_fused_kernel(x0_ref, x2_ref, x4_ref,
                      w1a_ref, w1b_ref, w1c_ref, b1_ref,
                      w2_ref, b2_ref, w3_ref, b3_ref,
                      o_ref):
    """Single-pass fused kernel: each input tile read once, output written once."""
    Bt, C, _ = x0_ref.shape
    for b in range(Bt):                                  # small static unroll (Bt <= 8)
        x0b = x0_ref[b]                                  # (C, HW)
        x2b = x2_ref[b]
        x4b = x4_ref[b]
        # Global pool: lane-axis sum (f32 accumulation), channels stay on sublanes.
        s0 = jnp.sum(x0b, axis=-1, keepdims=True, dtype=jnp.float32)   # (C, 1)
        s2 = jnp.sum(x2b, axis=-1, keepdims=True, dtype=jnp.float32)
        s4 = jnp.sum(x4b, axis=-1, keepdims=True, dtype=jnp.float32)
        e = _gate_mlp(s0, s2, s4, w1a_ref, w1b_ref, w1c_ref, b1_ref,
                      w2_ref, b2_ref, w3_ref, b3_ref)    # (3C, 1) f32
        g0 = e[0 * C:1 * C, :]                           # (C, 1) sublane slices
        g2 = e[1 * C:2 * C, :]
        g4 = e[2 * C:3 * C, :]
        # Gated sum in f32 (type promotion), single downcast at the store.
        o_ref[b] = (x0b * g0 + x2b * g2 + x4b * g4).astype(o_ref.dtype)


def csaf_twophase_kernel(x0_ref, x2_ref, x4_ref,
                         w1a_ref, w1b_ref, w1c_ref, b1_ref,
                         w2_ref, b2_ref, w3_ref, b3_ref,
                         o_ref,
                         s0_sc, s2_sc, s4_sc, g0_sc, g2_sc, g4_sc,
                         *, hw, n_hw, tile_hw):
    """Fallback for batch elements too large for VMEM.

    grid = (B, 2*n_hw): steps j < n_hw pool-accumulate spatial tiles into
    scratch; at j == n_hw the gate is computed; steps j >= n_hw re-stream the
    tiles and apply the gate (inputs read twice, output written once).
    """
    j = pl.program_id(1)
    _, C, _ = x0_ref.shape

    @pl.when(j == 0)
    def _():
        s0_sc[...] = jnp.zeros_like(s0_sc)
        s2_sc[...] = jnp.zeros_like(s2_sc)
        s4_sc[...] = jnp.zeros_like(s4_sc)

    @pl.when(j < n_hw)
    def _():
        # Mask the partial tail tile so garbage lanes never enter the pool sum.
        lane = jax.lax.broadcasted_iota(jnp.int32, (C, tile_hw), 1)
        valid = (lane + j * tile_hw) < hw

        def _acc(ref, sc):
            xv = jnp.where(valid, ref[0].astype(jnp.float32), 0.0)
            sc[...] = sc[...] + jnp.sum(xv, axis=-1, keepdims=True)

        _acc(x0_ref, s0_sc)
        _acc(x2_ref, s2_sc)
        _acc(x4_ref, s4_sc)

    @pl.when(j == n_hw)
    def _():
        e = _gate_mlp(s0_sc[...], s2_sc[...], s4_sc[...],
                      w1a_ref, w1b_ref, w1c_ref, b1_ref,
                      w2_ref, b2_ref, w3_ref, b3_ref)    # (3C, 1)
        g0_sc[...] = e[0 * C:1 * C, :]
        g2_sc[...] = e[1 * C:2 * C, :]
        g4_sc[...] = e[2 * C:3 * C, :]

    @pl.when(j >= n_hw)
    def _():
        o = (x0_ref[0] * g0_sc[...]
             + x2_ref[0] * g2_sc[...]
             + x4_ref[0] * g4_sc[...])
        o_ref[0] = o.astype(o_ref.dtype)


def _pick_batch_tile(B, per_elem_bytes):
    """Largest divisor of B that keeps blocks ~1-4 MiB, >=8 grid steps when
    possible, within the streaming VMEM budget, and a small unroll."""
    cap = min(
        B,
        _MAX_BT,
        max(1, _STREAM_BUDGET_BYTES // (8 * per_elem_bytes)),
        max(1, _TARGET_BLOCK_BYTES // max(per_elem_bytes, 1)),
        max(1, B // 8),
    )
    bt = 1
    for d in range(1, cap + 1):
        if B % d == 0:
            bt = d
    return bt


def csaf_forward(x0, x2, x4, params):
    B, C, H, W = x0.shape
    assert x2.shape == x0.shape and x4.shape == x0.shape
    w1, b1, w2, b2, w3, b3 = params
    assert w1.shape[0] == 3 * C, "CSAF in_chnls must equal 3 * per-input channels"
    hid = w1.shape[1]
    HW = H * W
    f32 = jnp.float32

    # MLP weights, pre-arranged for the kernel (tiny; kept in f32):
    #  - 1/HW pooling normalization folded into w1,
    #  - w1 pre-split into its three (C, hid) chunks (no in-kernel concat),
    #  - everything transposed so channels live on the sublane axis.
    w1f = w1.astype(f32) * (1.0 / float(HW))
    w1a = jnp.transpose(w1f[0 * C:1 * C])            # (hid, C)
    w1b = jnp.transpose(w1f[1 * C:2 * C])
    w1c = jnp.transpose(w1f[2 * C:3 * C])
    b1t = b1.astype(f32).reshape(hid, 1)
    w2t = jnp.transpose(w2.astype(f32))              # (hid, hid)
    b2t = b2.astype(f32).reshape(hid, 1)
    w3t = jnp.transpose(w3.astype(f32))              # (3C, hid)
    b3t = b3.astype(f32).reshape(3 * C, 1)
    weights = (w1a, w1b, w1c, b1t, w2t, b2t, w3t, b3t)

    # Flatten spatial dims only — no padding, no post-kernel slice.
    x0f = x0.reshape(B, C, HW)
    x2f = x2.reshape(B, C, HW)
    x4f = x4.reshape(B, C, HW)

    itemsize = jnp.dtype(x0.dtype).itemsize
    per_elem = C * HW * itemsize                     # one array, one batch element

    if 8 * per_elem <= _STREAM_BUDGET_BYTES:
        # ---- main fused single-pass path ----
        Bt = _pick_batch_tile(B, per_elem)
        x_spec = pl.BlockSpec((Bt, C, HW), lambda i: (i, 0, 0))

        def w_spec(a):
            return pl.BlockSpec(a.shape, lambda i, nd=a.ndim: (0,) * nd)

        out = pl.pallas_call(
            csaf_fused_kernel,
            out_shape=jax.ShapeDtypeStruct((B, C, HW), x0.dtype),
            grid=(B // Bt,),
            in_specs=[x_spec, x_spec, x_spec] + [w_spec(w) for w in weights],
            out_specs=x_spec,
            compiler_params=pltpu.CompilerParams(
                dimension_semantics=("parallel",),
                vmem_limit_bytes=_VMEM_LIMIT_BYTES),
        )(x0f, x2f, x4f, *weights)
    else:
        # ---- two-phase spatial-split fallback (very large C*H*W) ----
        T = (_STREAM_BUDGET_BYTES // (8 * C * itemsize)) // 128 * 128
        T = max(128, min(T, HW))
        n_hw = pl.cdiv(HW, T)

        x_spec = pl.BlockSpec((1, C, T), lambda b, j: (b, 0, j % n_hw))
        o_spec = pl.BlockSpec((1, C, T),
                              lambda b, j: (b, 0, jnp.maximum(j - n_hw, 0)))

        def w_spec(a):
            return pl.BlockSpec(a.shape, lambda b, j, nd=a.ndim: (0,) * nd)

        kernel = functools.partial(csaf_twophase_kernel,
                                   hw=HW, n_hw=n_hw, tile_hw=T)
        out = pl.pallas_call(
            kernel,
            out_shape=jax.ShapeDtypeStruct((B, C, HW), x0.dtype),
            grid=(B, 2 * n_hw),
            in_specs=[x_spec, x_spec, x_spec] + [w_spec(w) for w in weights],
            out_specs=o_spec,
            scratch_shapes=[pltpu.VMEM((C, 1), jnp.float32) for _ in range(6)],
            compiler_params=pltpu.CompilerParams(
                dimension_semantics=("parallel", "arbitrary"),
                vmem_limit_bytes=_VMEM_LIMIT_BYTES),
        )(x0f, x2f, x4f, *weights)

    return out.reshape(B, C, H, W)


def csaf_reference(x0, x2, x4, params):
    """Pure-JAX reference of the PyTorch forward (for correctness checks)."""
    w1, b1, w2, b2, w3, b3 = params
    s = jnp.concatenate([x0.mean(axis=(2, 3)),
                         x2.mean(axis=(2, 3)),
                         x4.mean(axis=(2, 3))], axis=1)          # (B, 3C)
    h = jax.nn.relu(s @ w1 + b1)
    h = jax.nn.relu(h @ w2 + b2)
    e = jax.nn.sigmoid(h @ w3 + b3)                              # (B, 3C)
    C = x0.shape[1]
    g0 = e[:, 0 * C:1 * C][:, :, None, None]
    g2 = e[:, 1 * C:2 * C][:, :, None, None]
    g4 = e[:, 2 * C:3 * C][:, :, None, None]
    return x0 * g0 + x2 * g2 + x4 * g4


def init_params(key, in_chnls, ratio=4):
    """Synthetic params matching CSAF.__init__ shapes (1x1 convs as dense)."""
    hid = in_chnls // ratio
    k1, k2, k3, k4, k5, k6 = jax.random.split(key, 6)
    w1 = jax.random.normal(k1, (in_chnls, hid), jnp.float32) * 0.2
    b1 = jax.random.normal(k2, (1, hid), jnp.float32) * 0.05
    w2 = jax.random.normal(k3, (hid, hid), jnp.float32) * 0.2
    b2 = jax.random.normal(k4, (1, hid), jnp.float32) * 0.05
    w3 = jax.random.normal(k5, (hid, in_chnls), jnp.float32) * 0.2
    b3 = jax.random.normal(k6, (1, in_chnls), jnp.float32) * 0.05
    return (w1, b1, w2, b2, w3, b3)


def _run_case(key, B, C, H, W, ratio=4):
    in_chnls = 3 * C                      # required so chunk/multiply line up
    kx0, kx2, kx4, kp = jax.random.split(key, 4)
    x0 = jax.random.normal(kx0, (B, C, H, W), jnp.float32)
    x2 = jax.random.normal(kx2, (B, C, H, W), jnp.float32)
    x4 = jax.random.normal(kx4, (B, C, H, W), jnp.float32)
    params = init_params(kp, in_chnls, ratio)

    out = jax.block_until_ready(csaf_forward(x0, x2, x4, params))
    ref = csaf_reference(x0, x2, x4, params)
    assert out.shape == (B, C, H, W)
    assert jnp.allclose(out, ref, atol=1e-5, rtol=1e-5), \
        f"mismatch vs reference for shape {(B, C, H, W)}"


if __name__ == "__main__":
    key = jax.random.PRNGKey(0)
    k1, k2 = jax.random.split(key)
    _run_case(k1, B=4, C=8, H=16, W=16)   # HW = 256 (multiple of 128)
    _run_case(k2, B=2, C=8, H=12, W=12)   # HW = 144 (NOT a multiple of 128): no pad/slice
    print("KERNEL_OK")
</pallas_src>

<mosaic_0001>
module attributes {stable_mosaic.version = 11 : i64} {
  func.func @csaf_fused_kernel(%arg0: i32, %arg1: memref<1x8x256xf32, #tpu.memory_space<vmem>>, %arg2: memref<1x8x256xf32, #tpu.memory_space<vmem>>, %arg3: memref<1x8x256xf32, #tpu.memory_space<vmem>>, %arg4: memref<6x8xf32, #tpu.memory_space<vmem>>, %arg5: memref<6x8xf32, #tpu.memory_space<vmem>>, %arg6: memref<6x8xf32, #tpu.memory_space<vmem>>, %arg7: memref<6x1xf32, #tpu.memory_space<vmem>>, %arg8: memref<6x6xf32, #tpu.memory_space<vmem>>, %arg9: memref<6x1xf32, #tpu.memory_space<vmem>>, %arg10: memref<24x6xf32, #tpu.memory_space<vmem>>, %arg11: memref<24x1xf32, #tpu.memory_space<vmem>>, %arg12: memref<1x8x256xf32, #tpu.memory_space<vmem>>) attributes {dimension_semantics = [#tpu.dimension_semantics<parallel>], iteration_bounds = array<i64: 4>, scalar_prefetch = 0 : i64, scratch_operands = 0 : i64, tpu.core_type = #tpu.core_type<tc>, window_params = [{transform_indices = @transform_0, window_bounds = array<i64: 1, 8, 256>}, {transform_indices = @transform_1, window_bounds = array<i64: 1, 8, 256>}, {transform_indices = @transform_2, window_bounds = array<i64: 1, 8, 256>}, {pipeline_mode = #tpu.pipeline_mode<synchronous>, transform_indices = @transform_3, window_bounds = array<i64: 6, 8>}, {pipeline_mode = #tpu.pipeline_mode<synchronous>, transform_indices = @transform_4, window_bounds = array<i64: 6, 8>}, {pipeline_mode = #tpu.pipeline_mode<synchronous>, transform_indices = @transform_5, window_bounds = array<i64: 6, 8>}, {pipeline_mode = #tpu.pipeline_mode<synchronous>, transform_indices = @transform_6, window_bounds = array<i64: 6, 1>}, {pipeline_mode = #tpu.pipeline_mode<synchronous>, transform_indices = @transform_7, window_bounds = array<i64: 6, 6>}, {pipeline_mode = #tpu.pipeline_mode<synchronous>, transform_indices = @transform_8, window_bounds = array<i64: 6, 1>}, {pipeline_mode = #tpu.pipeline_mode<synchronous>, transform_indices = @transform_9, window_bounds = array<i64: 24, 6>}, {pipeline_mode = #tpu.pipeline_mode<synchronous>, transform_indices = @transform_10, window_bounds = array<i64: 24, 1>}, {transform_indices = @transform_11, window_bounds = array<i64: 1, 8, 256>}]} {
    %c0 = arith.constant 0 : index
    %c0_0 = arith.constant 0 : index
    %c0_1 = arith.constant 0 : index
    %0 = vector.load %arg1[%c0, %c0_0, %c0_1] : memref<1x8x256xf32, #tpu.memory_space<vmem>>, vector<1x8x256xf32>
    %1 = vector.shape_cast %0 : vector<1x8x256xf32> to vector<8x256xf32>
    %c0_2 = arith.constant 0 : index
    %c0_3 = arith.constant 0 : index
    %c0_4 = arith.constant 0 : index
    %2 = vector.load %arg2[%c0_2, %c0_3, %c0_4] : memref<1x8x256xf32, #tpu.memory_space<vmem>>, vector<1x8x256xf32>
    %3 = vector.shape_cast %2 : vector<1x8x256xf32> to vector<8x256xf32>
    %c0_5 = arith.constant 0 : index
    %c0_6 = arith.constant 0 : index
    %c0_7 = arith.constant 0 : index
    %4 = vector.load %arg3[%c0_5, %c0_6, %c0_7] : memref<1x8x256xf32, #tpu.memory_space<vmem>>, vector<1x8x256xf32>
    %5 = vector.shape_cast %4 : vector<1x8x256xf32> to vector<8x256xf32>
    %cst = arith.constant dense<0.000000e+00> : vector<8xf32>
    %6 = vector.multi_reduction <add>, %1, %cst [1] : vector<8x256xf32> to vector<8xf32>
    %7 = vector.shape_cast %6 : vector<8xf32> to vector<8x1xf32>
    %cst_8 = arith.constant dense<0.000000e+00> : vector<8xf32>
    %8 = vector.multi_reduction <add>, %3, %cst_8 [1] : vector<8x256xf32> to vector<8xf32>
    %9 = vector.shape_cast %8 : vector<8xf32> to vector<8x1xf32>
    %cst_9 = arith.constant dense<0.000000e+00> : vector<8xf32>
    %10 = vector.multi_reduction <add>, %5, %cst_9 [1] : vector<8x256xf32> to vector<8xf32>
    %11 = vector.shape_cast %10 : vector<8xf32> to vector<8x1xf32>
    %c0_10 = arith.constant 0 : index
    %c0_11 = arith.constant 0 : index
    %12 = vector.load %arg4[%c0_10, %c0_11] : memref<6x8xf32, #tpu.memory_space<vmem>>, vector<6x8xf32>
    %cst_12 = arith.constant dense<0.000000e+00> : vector<6x1xf32>
    %13 = tpu.matmul %12, %7, %cst_12 {dimension_numbers = #tpu.dot_dimension_numbers<[1], [0], [0], [1], [0, 0, 1, 1], [], []>} : vector<6x8xf32>, vector<8x1xf32>, vector<6x1xf32> -> vector<6x1xf32>
    %c0_13 = arith.constant 0 : index
    %c0_14 = arith.constant 0 : index
    %14 = vector.load %arg5[%c0_13, %c0_14] : memref<6x8xf32, #tpu.memory_space<vmem>>, vector<6x8xf32>
    %cst_15 = arith.constant dense<0.000000e+00> : vector<6x1xf32>
    %15 = tpu.matmul %14, %9, %cst_15 {dimension_numbers = #tpu.dot_dimension_numbers<[1], [0], [0], [1], [0, 0, 1, 1], [], []>} : vector<6x8xf32>, vector<8x1xf32>, vector<6x1xf32> -> vector<6x1xf32>
    %16 = arith.addf %13, %15 : vector<6x1xf32>
    %c0_16 = arith.constant 0 : index
    %c0_17 = arith.constant 0 : index
    %17 = vector.load %arg6[%c0_16, %c0_17] : memref<6x8xf32, #tpu.memory_space<vmem>>, vector<6x8xf32>
    %cst_18 = arith.constant dense<0.000000e+00> : vector<6x1xf32>
    %18 = tpu.matmul %17, %11, %cst_18 {dimension_numbers = #tpu.dot_dimension_numbers<[1], [0], [0], [1], [0, 0, 1, 1], [], []>} : vector<6x8xf32>, vector<8x1xf32>, vector<6x1xf32> -> vector<6x1xf32>
    %19 = arith.addf %16, %18 : vector<6x1xf32>
    %c0_19 = arith.constant 0 : index
    %c0_20 = arith.constant 0 : index
    %20 = vector.load %arg7[%c0_19, %c0_20] : memref<6x1xf32, #tpu.memory_space<vmem>>, vector<6x1xf32>
    %21 = arith.addf %19, %20 : vector<6x1xf32>
    %cst_21 = arith.constant 0.000000e+00 : f32
    %22 = vector.broadcast %cst_21 : f32 to vector<6x1xf32>
    %23 = arith.maximumf %21, %22 : vector<6x1xf32>
    %c0_22 = arith.constant 0 : index
    %c0_23 = arith.constant 0 : index
    %24 = vector.load %arg8[%c0_22, %c0_23] : memref<6x6xf32, #tpu.memory_space<vmem>>, vector<6x6xf32>
    %cst_24 = arith.constant dense<0.000000e+00> : vector<6x1xf32>
    %25 = tpu.matmul %24, %23, %cst_24 {dimension_numbers = #tpu.dot_dimension_numbers<[1], [0], [0], [1], [0, 0, 1, 1], [], []>} : vector<6x6xf32>, vector<6x1xf32>, vector<6x1xf32> -> vector<6x1xf32>
    %c0_25 = arith.constant 0 : index
    %c0_26 = arith.constant 0 : index
    %26 = vector.load %arg9[%c0_25, %c0_26] : memref<6x1xf32, #tpu.memory_space<vmem>>, vector<6x1xf32>
    %27 = arith.addf %25, %26 : vector<6x1xf32>
    %cst_27 = arith.constant 0.000000e+00 : f32
    %28 = vector.broadcast %cst_27 : f32 to vector<6x1xf32>
    %29 = arith.maximumf %27, %28 : vector<6x1xf32>
    %c0_28 = arith.constant 0 : index
    %c0_29 = arith.constant 0 : index
    %30 = vector.load %arg10[%c0_28, %c0_29] : memref<24x6xf32, #tpu.memory_space<vmem>>, vector<24x6xf32>
    %cst_30 = arith.constant dense<0.000000e+00> : vector<24x1xf32>
    %31 = tpu.matmul %30, %29, %cst_30 {dimension_numbers = #tpu.dot_dimension_numbers<[1], [0], [0], [1], [0, 0, 1, 1], [], []>} : vector<24x6xf32>, vector<6x1xf32>, vector<24x1xf32> -> vector<24x1xf32>
    %c0_31 = arith.constant 0 : index
    %c0_32 = arith.constant 0 : index
    %32 = vector.load %arg11[%c0_31, %c0_32] : memref<24x1xf32, #tpu.memory_space<vmem>>, vector<24x1xf32>
    %33 = arith.addf %31, %32 : vector<24x1xf32>
    %34 = arith.negf %33 : vector<24x1xf32>
    %35 = math.exp %34 : vector<24x1xf32>
    %cst_33 = arith.constant 1.000000e+00 : f32
    %36 = vector.broadcast %cst_33 : f32 to vector<24x1xf32>
    %37 = arith.addf %36, %35 : vector<24x1xf32>
    %38 = arith.divf %36, %37 : vector<24x1xf32>
    %39 = vector.extract_strided_slice %38 {offsets = [0, 0], sizes = [8, 1], strides = [1, 1]} : vector<24x1xf32> to vector<8x1xf32>
    %40 = vector.extract_strided_slice %38 {offsets = [8, 0], sizes = [8, 1], strides = [1, 1]} : vector<24x1xf32> to vector<8x1xf32>
    %41 = vector.extract_strided_slice %38 {offsets = [16, 0], sizes = [8, 1], strides = [1, 1]} : vector<24x1xf32> to vector<8x1xf32>
    %42 = vector.broadcast %39 : vector<8x1xf32> to vector<8x256xf32>
    %43 = arith.mulf %1, %42 : vector<8x256xf32>
    %44 = vector.broadcast %40 : vector<8x1xf32> to vector<8x256xf32>
    %45 = arith.mulf %3, %44 : vector<8x256xf32>
    %46 = arith.addf %43, %45 : vector<8x256xf32>
    %47 = vector.broadcast %41 : vector<8x1xf32> to vector<8x256xf32>
    %48 = arith.mulf %5, %47 : vector<8x256xf32>
    %49 = arith.addf %46, %48 : vector<8x256xf32>
    %c0_34 = arith.constant 0 : index
    %c0_35 = arith.constant 0 : index
    %c0_36 = arith.constant 0 : index
    %50 = vector.load %arg12[%c0_34, %c0_35, %c0_36] : memref<1x8x256xf32, #tpu.memory_space<vmem>>, vector<1x8x256xf32>
    %51 = vector.shape_cast %50 : vector<1x8x256xf32> to vector<8x256xf32>
    %52 = vector.shape_cast %49 : vector<8x256xf32> to vector<1x8x256xf32>
    tpu.vector_store %arg12[%c0_34, %c0_35, %c0_36], %52 {strides = array<i32>} : memref<1x8x256xf32, #tpu.memory_space<vmem>>, vector<1x8x256xf32>,
    return
  }
  func.func @transform_0(%arg0: i32) -> (i32, i32, i32) {
    %c0_i32 = arith.constant 0 : i32
    %c0_i32_0 = arith.constant 0 : i32
    %c0_i32_1 = arith.constant 0 : i32
    return %arg0, %c0_i32, %c0_i32_0 : i32, i32, i32
  }
  func.func @transform_1(%arg0: i32) -> (i32, i32, i32) {
    %c0_i32 = arith.constant 0 : i32
    %c0_i32_0 = arith.constant 0 : i32
    %c0_i32_1 = arith.constant 0 : i32
    return %arg0, %c0_i32, %c0_i32_0 : i32, i32, i32
  }
  func.func @transform_2(%arg0: i32) -> (i32, i32, i32) {
    %c0_i32 = arith.constant 0 : i32
    %c0_i32_0 = arith.constant 0 : i32
    %c0_i32_1 = arith.constant 0 : i32
    return %arg0, %c0_i32, %c0_i32_0 : i32, i32, i32
  }
  func.func @transform_3(%arg0: i32) -> (i32, i32) {
    %c0_i32 = arith.constant 0 : i32
    %c0_i32_0 = arith.constant 0 : i32
    %c0_i32_1 = arith.constant 0 : i32
    return %c0_i32, %c0_i32_0 : i32, i32
  }
  func.func @transform_4(%arg0: i32) -> (i32, i32) {
    %c0_i32 = arith.constant 0 : i32
    %c0_i32_0 = arith.constant 0 : i32
    %c0_i32_1 = arith.constant 0 : i32
    return %c0_i32, %c0_i32_0 : i32, i32
  }
  func.func @transform_5(%arg0: i32) -> (i32, i32) {
    %c0_i32 = arith.constant 0 : i32
    %c0_i32_0 = arith.constant 0 : i32
    %c0_i32_1 = arith.constant 0 : i32
    return %c0_i32, %c0_i32_0 : i32, i32
  }
  func.func @transform_6(%arg0: i32) -> (i32, i32) {
    %c0_i32 = arith.constant 0 : i32
    %c0_i32_0 = arith.constant 0 : i32
    %c0_i32_1 = arith.constant 0 : i32
    return %c0_i32, %c0_i32_0 : i32, i32
  }
  func.func @transform_7(%arg0: i32) -> (i32, i32) {
    %c0_i32 = arith.constant 0 : i32
    %c0_i32_0 = arith.constant 0 : i32
    %c0_i32_1 = arith.constant 0 : i32
    return %c0_i32, %c0_i32_0 : i32, i32
  }
  func.func @transform_8(%arg0: i32) -> (i32, i32) {
    %c0_i32 = arith.constant 0 : i32
    %c0_i32_0 = arith.constant 0 : i32
    %c0_i32_1 = arith.constant 0 : i32
    return %c0_i32, %c0_i32_0 : i32, i32
  }
  func.func @transform_9(%arg0: i32) -> (i32, i32) {
    %c0_i32 = arith.constant 0 : i32
    %c0_i32_0 = arith.constant 0 : i32
    %c0_i32_1 = arith.constant 0 : i32
    return %c0_i32, %c0_i32_0 : i32, i32
  }
  func.func @transform_10(%arg0: i32) -> (i32, i32) {
    %c0_i32 = arith.constant 0 : i32
    %c0_i32_0 = arith.constant 0 : i32
    %c0_i32_1 = arith.constant 0 : i32
    return %c0_i32, %c0_i32_0 : i32, i32
  }
  func.func @transform_11(%arg0: i32) -> (i32, i32, i32) {
    %c0_i32 = arith.constant 0 : i32
    %c0_i32_0 = arith.constant 0 : i32
    %c0_i32_1 = arith.constant 0 : i32
    return %arg0, %c0_i32, %c0_i32_0 : i32, i32, i32
  }
}

</mosaic_0001>

<llo_original>
// kernel: tpu_custom_call.1
$region0: #{tpu_custom_call.1}
  #allocation0 [shape = 'u32[]', space=smem, size = 0x4, offset = 0x4, fixed_abs, tag = 'smem constant byte address 0x4 - core index']
  #allocation1 [shape = 'u32[144,128]{1,0:T(1,128)}', space=vmem, size = 0x12000, scoped, tag = 'internal scratch']
  %s0 = inlined_call_operand.vmem [shape: f32[4,8,256], index: 0, kind: input, shape index: {}]
  %s1 = inlined_call_operand.hbm [shape: f32[4,8,256], index: 1, kind: input, shape index: {}]
  %s2 = inlined_call_operand.hbm [shape: f32[4,8,256], index: 2, kind: input, shape index: {}]
  %s3 = inlined_call_operand.vmem [shape: f32[6,8], index: 3, kind: input, shape index: {}]
  %s4 = inlined_call_operand.hbm [shape: f32[6,8], index: 4, kind: input, shape index: {}]
  %s5 = inlined_call_operand.hbm [shape: f32[6,8], index: 5, kind: input, shape index: {}]
  %s6 = inlined_call_operand.vmem [shape: f32[6,1], index: 6, kind: input, shape index: {}]
  %s7 = inlined_call_operand.hbm [shape: f32[6,6], index: 7, kind: input, shape index: {}]
  %s8 = inlined_call_operand.vmem [shape: f32[6,1], index: 8, kind: input, shape index: {}]
  %s9 = inlined_call_operand.vmem [shape: f32[24,6], index: 9, kind: input, shape index: {}]
  %s10 = inlined_call_operand.vmem [shape: f32[24,1], index: 10, kind: input, shape index: {}]
  %s11 = inlined_call_operand.hbm [shape: f32[4,8,256], index: 11, kind: output, shape index: {}]
  %s12 = sld [smem:[#allocation0]]
  $region97: #{tpu_custom_call.1} parent=0
    _
  %s14 = ssub.s32 1, %s12
  %s15 = scalar_select 0, %s14, %s12
  $region1: #{tpu_custom_call.1} parent=0
    #allocation2 [shape = 'u8[16384]{0}', space=vmem, size = 0x4000, scoped, tag = 'input window, operand 1']
    #allocation3 [shape = 's32[2]{0}', space=sflag, size = 0x8, scoped, tag = 'scoped memory for tpu_custom_call.1']
    #allocation4 [shape = 's32[2]{0}', space=sflag, size = 0x8, scoped, tag = 'scoped memory for tpu_custom_call.1']
    #allocation5 [shape = 'u8[16384]{0}', space=vmem, size = 0x4000, scoped, tag = 'input window, operand 2']
    #allocation6 [shape = 's32[2]{0}', space=sflag, size = 0x8, scoped, tag = 'scoped memory for tpu_custom_call.1']
    #allocation7 [shape = 'u8[4096]{0}', space=vmem, size = 0x1000, scoped, tag = 'input window, operand 4, single buffered']
    #allocation8 [shape = 'u8[4096]{0}', space=vmem, size = 0x1000, scoped, tag = 'input window, operand 5, single buffered']
    #allocation9 [shape = 's32[1]{0}', space=sflag, size = 0x4, scoped, tag = 'scoped memory for tpu_custom_call.1']
    #allocation10 [shape = 'u8[4096]{0}', space=vmem, size = 0x1000, scoped, tag = 'input window, operand 7, single buffered']
    #allocation11 [shape = 'u8[16384]{0}', space=vmem, size = 0x4000, scoped, tag = 'output window, operand 0']
    %16 = vsyncpa [#allocation3], 0
    %s17 = scalar_lea.sflag [#allocation3], 1
    %18 = vsyncpa %s17, 0
    %19 = vsyncpa [#allocation6], 0
    %s20 = scalar_lea.sflag [#allocation6], 1
    %21 = vsyncpa %s20, 0
    %22 = vsyncpa [#allocation9], 0
    %23 = vsyncpa [#allocation4], 0
    %s24 = scalar_lea.sflag [#allocation4], 1
    %25 = vsyncpa %s24, 0
    loop: start=0, step=1, limit=6
    $region2: #{tpu_custom_call.1} parent=1 // loop_pre_header
      _
    $region3: #{tpu_custom_call.1} parent=1 // loop_header
      %s27 = sphi 0, %s31
      %p28 = scmp.ge.s32.totalorder %s27, 6
      %s37 = sphi 0, %s39
      %s40 = sphi 0, %s37
      %s41 = sphi 0, %s40
      %s57 = sphi 0, %s41
      %s63 = sphi 0, %s65
      %s66 = sphi 0, %s63
      %s67 = sphi 0, %s66
      %s83 = sphi 0, %s67
      %s89 = sphi 0, %s91
      %s92 = sphi 0, %s89
      %s93 = sphi 0, %s92
      %s109 = sphi 0, %s93
      %s113 = sphi 0, %s113
      %s115 = sphi 0, %s113
      %s116 = sphi 0, %s115
      %s130 = sphi 0, %s116
      %s134 = sphi 0, %s134
      %s136 = sphi 0, %s134
      %s137 = sphi 0, %s136
      %s151 = sphi 0, %s137
      %s155 = sphi 0, %s155
      %s157 = sphi 0, %s155
      %s158 = sphi 0, %s157
      %s172 = sphi 0, %s158
      %s176 = sphi 0, %s176
      %s178 = sphi 0, %s176
      %s179 = sphi 0, %s178
      %s193 = sphi 0, %s179
      %s197 = sphi 0, %s197
      %s199 = sphi 0, %s197
      %s200 = sphi 0, %s199
      %s214 = sphi 0, %s200
      %s218 = sphi 0, %s218
      %s220 = sphi 0, %s218
      %s221 = sphi 0, %s220
      %s235 = sphi 0, %s221
      %s239 = sphi 0, %s239
      %s241 = sphi 0, %s239
      %s242 = sphi 0, %s241
      %s256 = sphi 0, %s242
      %s260 = sphi 0, %s260
      %s262 = sphi 0, %s260
      %s263 = sphi 0, %s262
      %s277 = sphi 0, %s263
      %s283 = sphi 0, %s285
      %s286 = sphi 0, %s283
      %s287 = sphi 0, %s286
      %s303 = sphi 0, %s287
    $region4: #{tpu_custom_call.1} parent=1 // loop_header_branch
      %30 = sbr.rel (%p28) target = $region8
    $region5: #{tpu_custom_call.1} parent=1 // loop_body
      %s32 = ssub.s32 %s27, 1
      %s33 = ssub.s32 %s27, 2
      %s34 = sadd.s32 %s27, 1
      %s35 = ssub.s32 %s27, %s34
      %p36 = scmp.eq.s32.totalorder %s35, 0
      %s38 = sadd.s32 %s37, 1
      %s39 = scalar_select %p36, %s37, %s38
      %p42 = pneg %p36
      %p43 = scmp.eq.s32.totalorder %s27, 3
      %p44 = por %p42, %p43
      %p45 = scmp.ne.s32.totalorder %s37, %s40
      %p46 = scmp.eq.s32.totalorder %s27, 0
      %p47 = por %p45, %p46
      %p48 = scmp.ne.s32.totalorder %s37, %s40
      %p49 = scmp.eq.s32.totalorder %s32, 3
      %p50 = por %p48, %p49
      %p51 = scmp.ne.s32.totalorder %s40, %s41
      %p52 = scmp.eq.s32.totalorder %s32, 0
      %p53 = por %p51, %p52
      %p54 = scmp.ne.s32.totalorder %s40, %s41
      %p55 = scmp.eq.s32.totalorder %s33, 3
      %p56 = por %p54, %p55
      %p58 = scmp.ne.s32.totalorder %s41, %s57
      %p59 = scmp.eq.s32.totalorder %s33, 0
      %p60 = por %p58, %p59
      %s61 = ssub.s32 %s27, %s34
      %p62 = scmp.eq.s32.totalorder %s61, 0
      %s64 = sadd.s32 %s63, 1
      %s65 = scalar_select %p62, %s63, %s64
      %p68 = pneg %p62
      %p69 = scmp.eq.s32.totalorder %s27, 3
      %p70 = por %p68, %p69
      %p71 = scmp.ne.s32.totalorder %s63, %s66
      %p72 = scmp.eq.s32.totalorder %s27, 0
      %p73 = por %p71, %p72
      %p74 = scmp.ne.s32.totalorder %s63, %s66
      %p75 = scmp.eq.s32.totalorder %s32, 3
      %p76 = por %p74, %p75
      %p77 = scmp.ne.s32.totalorder %s66, %s67
      %p78 = scmp.eq.s32.totalorder %s32, 0
      %p79 = por %p77, %p78
      %p80 = scmp.ne.s32.totalorder %s66, %s67
      %p81 = scmp.eq.s32.totalorder %s33, 3
      %p82 = por %p80, %p81
      %p84 = scmp.ne.s32.totalorder %s67, %s83
      %p85 = scmp.eq.s32.totalorder %s33, 0
      %p86 = por %p84, %p85
      %s87 = ssub.s32 %s27, %s34
      %p88 = scmp.eq.s32.totalorder %s87, 0
      %s90 = sadd.s32 %s89, 1
      %s91 = scalar_select %p88, %s89, %s90
      %p94 = pneg %p88
      %p95 = scmp.eq.s32.totalorder %s27, 3
      %p96 = por %p94, %p95
      %p97 = scmp.ne.s32.totalorder %s89, %s92
      %p98 = scmp.eq.s32.totalorder %s27, 0
      %p99 = por %p97, %p98
      %p100 = scmp.ne.s32.totalorder %s89, %s92
      %p101 = scmp.eq.s32.totalorder %s32, 3
      %p102 = por %p100, %p101
      %p103 = scmp.ne.s32.totalorder %s92, %s93
      %p104 = scmp.eq.s32.totalorder %s32, 0
      %p105 = por %p103, %p104
      %p106 = scmp.ne.s32.totalorder %s92, %s93
      %p107 = scmp.eq.s32.totalorder %s33, 3
      %p108 = por %p106, %p107
      %p110 = scmp.ne.s32.totalorder %s93, %s109
      %p111 = scmp.eq.s32.totalorder %s33, 0
      %p112 = por %p110, %p111
      %s114 = sadd.s32 %s113, 1
      %p117 = scmp.eq.s32.totalorder %s27, 3
      %p118 = scmp.ne.s32.totalorder %s113, %s115
      %p119 = scmp.eq.s32.totalorder %s27, 0
      %p120 = por %p118, %p119
      %p121 = scmp.ne.s32.totalorder %s113, %s115
      %p122 = scmp.eq.s32.totalorder %s32, 3
      %p123 = por %p121, %p122
      %p124 = scmp.ne.s32.totalorder %s115, %s116
      %p125 = scmp.eq.s32.totalorder %s32, 0
      %p126 = por %p124, %p125
      %p127 = scmp.ne.s32.totalorder %s115, %s116
      %p128 = scmp.eq.s32.totalorder %s33, 3
      %p129 = por %p127, %p128
      %p131 = scmp.ne.s32.totalorder %s116, %s130
      %p132 = scmp.eq.s32.totalorder %s33, 0
      %p133 = por %p131, %p132
      %s135 = sadd.s32 %s134, 1
      %p138 = scmp.eq.s32.totalorder %s27, 3
      %p139 = scmp.ne.s32.totalorder %s134, %s136
      %p140 = scmp.eq.s32.totalorder %s27, 0
      %p141 = por %p139, %p140
      %p142 = scmp.ne.s32.totalorder %s134, %s136
      %p143 = scmp.eq.s32.totalorder %s32, 3
      %p144 = por %p142, %p143
      %p145 = scmp.ne.s32.totalorder %s136, %s137
      %p146 = scmp.eq.s32.totalorder %s32, 0
      %p147 = por %p145, %p146
      %p148 = scmp.ne.s32.totalorder %s136, %s137
      %p149 = scmp.eq.s32.totalorder %s33, 3
      %p150 = por %p148, %p149
      %p152 = scmp.ne.s32.totalorder %s137, %s151
      %p153 = scmp.eq.s32.totalorder %s33, 0
      %p154 = por %p152, %p153
      %s156 = sadd.s32 %s155, 1
      %p159 = scmp.eq.s32.totalorder %s27, 3
      %p160 = scmp.ne.s32.totalorder %s155, %s157
      %p161 = scmp.eq.s32.totalorder %s27, 0
      %p162 = por %p160, %p161
      %p163 = scmp.ne.s32.totalorder %s155, %s157
      %p164 = scmp.eq.s32.totalorder %s32, 3
      %p165 = por %p163, %p164
      %p166 = scmp.ne.s32.totalorder %s157, %s158
      %p167 = scmp.eq.s32.totalorder %s32, 0
      %p168 = por %p166, %p167
      %p169 = scmp.ne.s32.totalorder %s157, %s158
      %p170 = scmp.eq.s32.totalorder %s33, 3
      %p171 = por %p169, %p170
      %p173 = scmp.ne.s32.totalorder %s158, %s172
      %p174 = scmp.eq.s32.totalorder %s33, 0
      %p175 = por %p173, %p174
      %s177 = sadd.s32 %s176, 1
      %p180 = scmp.eq.s32.totalorder %s27, 3
      %p181 = scmp.ne.s32.totalorder %s176, %s178
      %p182 = scmp.eq.s32.totalorder %s27, 0
      %p183 = por %p181, %p182
      %p184 = scmp.ne.s32.totalorder %s176, %s178
      %p185 = scmp.eq.s32.totalorder %s32, 3
      %p186 = por %p184, %p185
      %p187 = scmp.ne.s32.totalorder %s178, %s179
      %p188 = scmp.eq.s32.totalorder %s32, 0
      %p189 = por %p187, %p188
      %p190 = scmp.ne.s32.totalorder %s178, %s179
      %p191 = scmp.eq.s32.totalorder %s33, 3
      %p192 = por %p190, %p191
      %p194 = scmp.ne.s32.totalorder %s179, %s193
      %p195 = scmp.eq.s32.totalorder %s33, 0
      %p196 = por %p194, %p195
      %s198 = sadd.s32 %s197, 1
      %p201 = scmp.eq.s32.totalorder %s27, 3
      %p202 = scmp.ne.s32.totalorder %s197, %s199
      %p203 = scmp.eq.s32.totalorder %s27, 0
      %p204 = por %p202, %p203
      %p205 = scmp.ne.s32.totalorder %s197, %s199
      %p206 = scmp.eq.s32.totalorder %s32, 3
      %p207 = por %p205, %p206
      %p208 = scmp.ne.s32.totalorder %s199, %s200
      %p209 = scmp.eq.s32.totalorder %s32, 0
      %p210 = por %p208, %p209
      %p211 = scmp.ne.s32.totalorder %s199, %s200
      %p212 = scmp.eq.s32.totalorder %s33, 3
      %p213 = por %p211, %p212
      %p215 = scmp.ne.s32.totalorder %s200, %s214
      %p216 = scmp.eq.s32.totalorder %s33, 0
      %p217 = por %p215, %p216
      %s219 = sadd.s32 %s218, 1
      %p222 = scmp.eq.s32.totalorder %s27, 3
      %p223 = scmp.ne.s32.totalorder %s218, %s220
      %p224 = scmp.eq.s32.totalorder %s27, 0
      %p225 = por %p223, %p224
      %p226 = scmp.ne.s32.totalorder %s218, %s220
      %p227 = scmp.eq.s32.totalorder %s32, 3
      %p228 = por %p226, %p227
      %p229 = scmp.ne.s32.totalorder %s220, %s221
      %p230 = scmp.eq.s32.totalorder %s32, 0
      %p231 = por %p229, %p230
      %p232 = scmp.ne.s32.totalorder %s220, %s221
      %p233 = scmp.eq.s32.totalorder %s33, 3
      %p234 = por %p232, %p233
      %p236 = scmp.ne.s32.totalorder %s221, %s235
      %p237 = scmp.eq.s32.totalorder %s33, 0
      %p238 = por %p236, %p237
      %s240 = sadd.s32 %s239, 1
      %p243 = scmp.eq.s32.totalorder %s27, 3
      %p244 = scmp.ne.s32.totalorder %s239, %s241
      %p245 = scmp.eq.s32.totalorder %s27, 0
      %p246 = por %p244, %p245
      %p247 = scmp.ne.s32.totalorder %s239, %s241
      %p248 = scmp.eq.s32.totalorder %s32, 3
      %p249 = por %p247, %p248
      %p250 = scmp.ne.s32.totalorder %s241, %s242
      %p251 = scmp.eq.s32.totalorder %s32, 0
      %p252 = por %p250, %p251
      %p253 = scmp.ne.s32.totalorder %s241, %s242
      %p254 = scmp.eq.s32.totalorder %s33, 3
      %p255 = por %p253, %p254
      %p257 = scmp.ne.s32.totalorder %s242, %s256
      %p258 = scmp.eq.s32.totalorder %s33, 0
      %p259 = por %p257, %p258
      %s261 = sadd.s32 %s260, 1
      %p264 = scmp.eq.s32.totalorder %s27, 3
      %p265 = scmp.ne.s32.totalorder %s260, %s262
      %p266 = scmp.eq.s32.totalorder %s27, 0
      %p267 = por %p265, %p266
      %p268 = scmp.ne.s32.totalorder %s260, %s262
      %p269 = scmp.eq.s32.totalorder %s32, 3
      %p270 = por %p268, %p269
      %p271 = scmp.ne.s32.totalorder %s262, %s263
      %p272 = scmp.eq.s32.totalorder %s32, 0
      %p273 = por %p271, %p272
      %p274 = scmp.ne.s32.totalorder %s262, %s263
      %p275 = scmp.eq.s32.totalorder %s33, 3
      %p276 = por %p274, %p275
      %p278 = scmp.ne.s32.totalorder %s263, %s277
      %p279 = scmp.eq.s32.totalorder %s33, 0
      %p280 = por %p278, %p279
      %s281 = ssub.s32 %s27, %s34
      %p282 = scmp.eq.s32.totalorder %s281, 0
      %s284 = sadd.s32 %s283, 1
      %s285 = scalar_select %p282, %s283, %s284
      %p288 = pneg %p282
      %p289 = scmp.eq.s32.totalorder %s27, 3
      %p290 = por %p288, %p289
      %p291 = scmp.ne.s32.totalorder %s283, %s286
      %p292 = scmp.eq.s32.totalorder %s27, 0
      %p293 = por %p291, %p292
      %p294 = scmp.ne.s32.totalorder %s283, %s286
      %p295 = scmp.eq.s32.totalorder %s32, 3
      %p296 = por %p294, %p295
      %p297 = scmp.ne.s32.totalorder %s286, %s287
      %p298 = scmp.eq.s32.totalorder %s32, 0
      %p299 = por %p297, %p298
      %p300 = scmp.ne.s32.totalorder %s286, %s287
      %p301 = scmp.eq.s32.totalorder %s33, 3
      %p302 = por %p300, %p301
      %p304 = scmp.ne.s32.totalorder %s287, %s303
      %p305 = scmp.eq.s32.totalorder %s33, 0
      %p306 = por %p304, %p305
      %p307 = scmp.le.s32.totalorder 1, %s27
      %p308 = scmp.lt.s32.totalorder %s27, 5
      %p309 = pnand %p307, %p308
      %p310 = pneg %p309
      // Predicated region
      $region9: #{tpu_custom_call.1} parent=5 // pred_check
        _
      $region10: #{tpu_custom_call.1} parent=5 // pred_check_branch
        %312 = sbr.rel (%p309) target = $region12
      $region11: #{tpu_custom_call.1} parent=5 // pred_region
        %s313 = ssub.s32 %s27, 1
        // Predicated region
        $region13: #{tpu_custom_call.1} parent=11 // pred_check
          %p314 = pneg %p126
        $region14: #{tpu_custom_call.1} parent=11 // pred_check_branch
          %316 = sbr.rel (%p314) target = $region16
        $region15: #{tpu_custom_call.1} parent=11 // pred_region
          _
        $region16: #{tpu_custom_call.1} parent=11 // pred_fallthru
          _
        // Predicated region
        $region17: #{tpu_custom_call.1} parent=11 // pred_check
          %p317 = pneg %p147
        $region18: #{tpu_custom_call.1} parent=11 // pred_check_branch
          %319 = sbr.rel (%p317) target = $region20
        $region19: #{tpu_custom_call.1} parent=11 // pred_region
          %s321 = ssub.s32 128, 128
          %322 = vsyncadd [#allocation6], %s321
          %s324 = sshll.u32 [#allocation7], 4
          %s325 = int_to_ptr.vmem [resolvable:$true] %s324
          %327 = dma.hbm_to_vmem [thread:$0]  %s4, 128, %s325, [#allocation6]
        $region20: #{tpu_custom_call.1} parent=11 // pred_fallthru
          _
        // Predicated region
        $region21: #{tpu_custom_call.1} parent=11 // pred_check
          %p328 = pneg %p168
        $region22: #{tpu_custom_call.1} parent=11 // pred_check_branch
          %330 = sbr.rel (%p328) target = $region24
        $region23: #{tpu_custom_call.1} parent=11 // pred_region
          %s332 = ssub.s32 128, 128
          %333 = vsyncadd [#allocation9], %s332
          %s335 = sshll.u32 [#allocation8], 4
          %s336 = int_to_ptr.vmem [resolvable:$true] %s335
          %338 = dma.hbm_to_vmem [thread:$0]  %s5, 128, %s336, [#allocation9]
        $region24: #{tpu_custom_call.1} parent=11 // pred_fallthru
          _
        // Predicated region
        $region25: #{tpu_custom_call.1} parent=11 // pred_check
          %p339 = pneg %p189
        $region26: #{tpu_custom_call.1} parent=11 // pred_check_branch
          %341 = sbr.rel (%p339) target = $region28
        $region27: #{tpu_custom_call.1} parent=11 // pred_region
          _
        $region28: #{tpu_custom_call.1} parent=11 // pred_fallthru
          _
        // Predicated region
        $region29: #{tpu_custom_call.1} parent=11 // pred_check
          %p342 = pneg %p210
        $region30: #{tpu_custom_call.1} parent=11 // pred_check_branch
          %344 = sbr.rel (%p342) target = $region32
        $region31: #{tpu_custom_call.1} parent=11 // pred_region
          %s346 = ssub.s32 128, 128
          %347 = vsyncadd [#allocation9], %s346
          %s349 = sshll.u32 [#allocation10], 4
          %s350 = int_to_ptr.vmem [resolvable:$true] %s349
          %352 = dma.hbm_to_vmem [thread:$0]  %s7, 128, %s350, [#allocation9]
        $region32: #{tpu_custom_call.1} parent=11 // pred_fallthru
          _
        // Predicated region
        $region33: #{tpu_custom_call.1} parent=11 // pred_check
          %p353 = pneg %p231
        $region34: #{tpu_custom_call.1} parent=11 // pred_check_branch
          %355 = sbr.rel (%p353) target = $region36
        $region35: #{tpu_custom_call.1} parent=11 // pred_region
          _
        $region36: #{tpu_custom_call.1} parent=11 // pred_fallthru
          _
        // Predicated region
        $region37: #{tpu_custom_call.1} parent=11 // pred_check
          %p356 = pneg %p252
        $region38: #{tpu_custom_call.1} parent=11 // pred_check_branch
          %358 = sbr.rel (%p356) target = $region40
        $region39: #{tpu_custom_call.1} parent=11 // pred_region
          _
        $region40: #{tpu_custom_call.1} parent=11 // pred_fallthru
          _
        // Predicated region
        $region41: #{tpu_custom_call.1} parent=11 // pred_check
          %p359 = pneg %p273
        $region42: #{tpu_custom_call.1} parent=11 // pred_check_branch
          %361 = sbr.rel (%p359) target = $region44
        $region43: #{tpu_custom_call.1} parent=11 // pred_region
          _
        $region44: #{tpu_custom_call.1} parent=11 // pred_fallthru
          _
      $region12: #{tpu_custom_call.1} parent=5 // pred_fallthru
        _
      %p362 = scmp.lt.s32.totalorder %s27, 4
      // Predicated region
      $region45: #{tpu_custom_call.1} parent=5 // pred_check
        %p363 = pneg %p362
      $region46: #{tpu_custom_call.1} parent=5 // pred_check_branch
        %365 = sbr.rel (%p363) target = $region48
      $region47: #{tpu_custom_call.1} parent=5 // pred_region
        // Predicated region
        $region49: #{tpu_custom_call.1} parent=47 // pred_check
          %p366 = pneg %p47
        $region50: #{tpu_custom_call.1} parent=47 // pred_check_branch
          %368 = sbr.rel (%p366) target = $region52
        $region51: #{tpu_custom_call.1} parent=47 // pred_region
          %p369 = scmp.lt.s32.totalorder %s27, 3
          %s370 = scalar_select %p369, %s27, 3
          %s371 = smul.addr %s370, 2
          %s372 = smul.addr %s371, 8
          %s373 = scalar_lea.vmem %s0, %s372
        $region52: #{tpu_custom_call.1} parent=47 // pred_fallthru
          _
        // Predicated region
        $region53: #{tpu_custom_call.1} parent=47 // pred_check
          %p374 = pneg %p73
        $region54: #{tpu_custom_call.1} parent=47 // pred_check_branch
          %376 = sbr.rel (%p374) target = $region56
        $region55: #{tpu_custom_call.1} parent=47 // pred_region
          %s377 = sand.u32 %s63, 1
          %s378 = scalar_lea.sflag [#allocation3], %s377
          %s379 = sand.u32 %s63, 1
          %s380 = smul.addr %s379, 16
          %s381 = scalar_lea.vmem [#allocation2], %s380
          %s383 = ssub.s32 256, 256
          %384 = vsyncadd %s378, %s383
          %s385 = smul.addr %s27, 2
          %s386 = smul.addr %s385, 128
          %s387 = scalar_lea.hbm %s1, %s386
          %s389 = sshll.u32 %s381, 4
          %s390 = int_to_ptr.vmem [resolvable:$true] %s389
          %392 = dma.hbm_to_vmem [thread:$0]  %s387, 256, %s390, %s378
        $region56: #{tpu_custom_call.1} parent=47 // pred_fallthru
          _
        // Predicated region
        $region57: #{tpu_custom_call.1} parent=47 // pred_check
          %p393 = pneg %p99
        $region58: #{tpu_custom_call.1} parent=47 // pred_check_branch
          %395 = sbr.rel (%p393) target = $region60
        $region59: #{tpu_custom_call.1} parent=47 // pred_region
          %s396 = sand.u32 %s27, 1
          %s397 = scalar_lea.sflag [#allocation6], %s396
          %s398 = sand.u32 %s89, 1
          %s399 = smul.addr %s398, 16
          %s400 = scalar_lea.vmem [#allocation5], %s399
          %s402 = ssub.s32 256, 256
          %403 = vsyncadd %s397, %s402
          %s404 = smul.addr %s27, 2
          %s405 = smul.addr %s404, 128
          %s406 = scalar_lea.hbm %s2, %s405
          %s408 = sshll.u32 %s400, 4
          %s409 = int_to_ptr.vmem [resolvable:$true] %s408
          %411 = dma.hbm_to_vmem [thread:$0]  %s406, 256, %s409, %s397
        $region60: #{tpu_custom_call.1} parent=47 // pred_fallthru
          _
      $region48: #{tpu_custom_call.1} parent=5 // pred_fallthru
        _
      %p412 = scmp.le.s32.totalorder 1, %s27
      %p413 = scmp.lt.s32.totalorder %s27, 5
      %p414 = pnand %p412, %p413
      %p415 = pneg %p414
      // Predicated region
      $region61: #{tpu_custom_call.1} parent=5 // pred_check
        _
      $region62: #{tpu_custom_call.1} parent=5 // pred_check_branch
        %417 = sbr.rel (%p414) target = $region64
      $region63: #{tpu_custom_call.1} parent=5 // pred_region
        %s418 = ssub.s32 %s27, 1
        %s419 = sand.u32 %s66, 1
        %s420 = scalar_lea.sflag [#allocation3], %s419
        %s421 = sand.u32 %s66, 1
        %s422 = smul.addr %s421, 16
        %s423 = scalar_lea.vmem [#allocation2], %s422
        // Predicated region
        $region65: #{tpu_custom_call.1} parent=63 // pred_check
          %p424 = pneg %p79
        $region66: #{tpu_custom_call.1} parent=63 // pred_check_branch
          %426 = sbr.rel (%p424) target = $region68
        $region67: #{tpu_custom_call.1} parent=63 // pred_region
          %427 = dma.done %s420, 256
        $region68: #{tpu_custom_call.1} parent=63 // pred_fallthru
          _
        %s428 = sand.u32 %s32, 1
        %s429 = scalar_lea.sflag [#allocation6], %s428
        %s430 = sand.u32 %s92, 1
        %s431 = smul.addr %s430, 16
        %s432 = scalar_lea.vmem [#allocation5], %s431
        // Predicated region
        $region69: #{tpu_custom_call.1} parent=63 // pred_check
          %p433 = pneg %p105
        $region70: #{tpu_custom_call.1} parent=63 // pred_check_branch
          %435 = sbr.rel (%p433) target = $region72
        $region71: #{tpu_custom_call.1} parent=63 // pred_region
          %436 = dma.done %s429, 256
        $region72: #{tpu_custom_call.1} parent=63 // pred_fallthru
          _
        // Predicated region
        $region73: #{tpu_custom_call.1} parent=63 // pred_check
          %p437 = pneg %p147
        $region74: #{tpu_custom_call.1} parent=63 // pred_check_branch
          %439 = sbr.rel (%p437) target = $region76
        $region75: #{tpu_custom_call.1} parent=63 // pred_region
          %440 = dma.done [#allocation6], 128
        $region76: #{tpu_custom_call.1} parent=63 // pred_fallthru
          _
        // Predicated region
        $region77: #{tpu_custom_call.1} parent=63 // pred_check
          %p441 = pneg %p168
        $region78: #{tpu_custom_call.1} parent=63 // pred_check_branch
          %443 = sbr.rel (%p441) target = $region80
        $region79: #{tpu_custom_call.1} parent=63 // pred_region
          %444 = dma.done [#allocation9], 128
        $region80: #{tpu_custom_call.1} parent=63 // pred_fallthru
          _
        // Predicated region
        $region81: #{tpu_custom_call.1} parent=63 // pred_check
          %p445 = pneg %p210
        $region82: #{tpu_custom_call.1} parent=63 // pred_check_branch
          %447 = sbr.rel (%p445) target = $region84
        $region83: #{tpu_custom_call.1} parent=63 // pred_region
          %448 = dma.done [#allocation9], 128
        $region84: #{tpu_custom_call.1} parent=63 // pred_fallthru
          _
        %p449 = scmp.lt.s32.totalorder %s32, 3
        %s450 = scalar_select %p449, %s32, 3
        %s451 = smul.addr %s450, 2
        %s452 = smul.addr %s451, 8
        %s453 = scalar_lea.vmem %s0, %s452
        %p454 = pneg %p53
        %p455 = pneg %p50
        %s456 = sand.u32 %s66, 1
        %s457 = scalar_lea.sflag [#allocation3], %s456
        %s458 = sand.u32 %s66, 1
        %s459 = smul.addr %s458, 16
        %s460 = scalar_lea.vmem [#allocation2], %s459
        %p461 = pneg %p79
        %p462 = pneg %p76
        %s463 = sand.u32 %s32, 1
        %s464 = scalar_lea.sflag [#allocation6], %s463
        %s465 = sand.u32 %s92, 1
        %s466 = smul.addr %s465, 16
        %s467 = scalar_lea.vmem [#allocation5], %s466
        %p468 = pneg %p105
        %p469 = pneg %p102
        %p470 = pneg %p126
        %p471 = pneg %p123
        %p472 = pneg %p147
        %p473 = pneg %p144
        %p474 = pneg %p168
        %p475 = pneg %p165
        %p476 = pneg %p189
        %p477 = pneg %p186
        %p478 = pneg %p210
        %p479 = pneg %p207
        %p480 = pneg %p231
        %p481 = pneg %p228
        %p482 = pneg %p252
        %p483 = pneg %p249
        %p484 = pneg %p273
        %p485 = pneg %p270
        %p486 = pneg %p299
        %p487 = pneg %p296
        %s488 = sand.u32 %s286, 1
        %s489 = scalar_lea.sflag [#allocation4], %s488
        %s490 = sand.u32 %s286, 1
        %s491 = smul.addr %s490, 16
        %s492 = scalar_lea.vmem [#allocation11], %s491
        %p493 = scmp.lt.s32.totalorder %s32, 3
        %s494 = scalar_select %p493, %s32, 3
        %s495 = smul.addr %s494, 2
        %s496 = smul.addr %s495, 8
        %s497 = scalar_lea.vmem %s0, %s496
        %v498 = vld [vmem:[%s497] sm:$0xff]
        %v499 = vld [vmem:[%s497 + $0x8] sm:$0xff]
        %v500 = vld [vmem:[%s423] sm:$0xff]
        %v501 = vld [vmem:[%s423 + $0x8] sm:$0xff]
        %v502 = vld [vmem:[%s432] sm:$0xff]
        %v503 = vld [vmem:[%s432 + $0x8] sm:$0xff]
        %v504 = vadd.f32 %v498, %v499
        %505 = vadd.xlane.f32.xlu0 %v504
        %v506 = vpop.xlane.xlu0 %505
        %v507 = vadd.f32 %v500, %v501
        %508 = vadd.xlane.f32.xlu0 %v507
        %v509 = vpop.xlane.xlu0 %508
        %v510 = vadd.f32 %v502, %v503
        %511 = vadd.xlane.f32.xlu0 %v510
        %v512 = vpop.xlane.xlu0 %511
        %v513 = vld [vmem:[%s3] sm:$0x3f]
        %v514 = vld [vmem:[#allocation7] sm:$0x3f]
        %vm515 = vcmask 64512
        %v517 = vsel %vm515, %v514, 0
        %519 = vmatprep.subr.mxu0 0.0
        %520 = vmatpush1.msra.mxu0 0.0
        %521 = vmatprep.subr.mxu0 0.0
        %522 = vmatpush1.msra.mxu0 0.0
        %523 = vmatprep.subr.mxu0 0.0
        %524 = vmatpush1.msra.mxu0 0.0
        %525 = vmatprep.subr.mxu0 0.0
        %526 = vmatpush1.msra.mxu0 0.0
        %527 = vmatprep.subr.mxu0 0.0
        %528 = vmatpush1.msra.mxu0 0.0
        %529 = vmatprep.subr.mxu0 0.0
        %530 = vmatpush1.msra.mxu0 0.0
        %531 = vmatprep.subr.mxu0 0.0
        %532 = vmatpush1.msra.mxu0 0.0
        %533 = vmatprep.subr.mxu0 0.0
        %534 = vmatpush1.msra.mxu0 0.0
        %535 = vmatprep.subr.mxu0 0.0
        %536 = vmatpush1.msra.mxu0 0.0
        %537 = vmatprep.subr.mxu0 0.0
        %538 = vmatpush1.msra.mxu0 0.0
        %539 = vmatprep.subr.mxu0 0.0
        %540 = vmatpush1.msra.mxu0 0.0
        %541 = vmatprep.subr.mxu0 0.0
        %542 = vmatpush1.msra.mxu0 0.0
        %543 = vmatprep.subr.mxu0 0.0
        %544 = vmatpush1.msra.mxu0 0.0
        %545 = vmatprep.subr.mxu0 0.0
        %546 = vmatpush1.msra.mxu0 0.0
        %547 = vmatprep.subr.mxu0 0.0
        %548 = vmatpush1.msra.mxu0 0.0
        %549 = vmatprep.subr.mxu0 0.0
        %550 = vmatpush1.msra.mxu0 %v509
        %551 = vmatprep.subr.mxu0 0.0
        %552 = vmatpush2.msra.mxu0 0.0
        %553 = vmatprep.subr.mxu0 0.0
        %554 = vmatpush2.msra.mxu0 0.0
        %555 = vmatprep.subr.mxu0 0.0
        %556 = vmatpush2.msra.mxu0 0.0
        %557 = vmatprep.subr.mxu0 0.0
        %558 = vmatpush2.msra.mxu0 0.0
        %559 = vmatprep.subr.mxu0 0.0
        %560 = vmatpush2.msra.mxu0 0.0
        %561 = vmatprep.subr.mxu0 0.0
        %562 = vmatpush2.msra.mxu0 0.0
        %563 = vmatprep.subr.mxu0 0.0
        %564 = vmatpush2.msra.mxu0 0.0
        %565 = vmatprep.subr.mxu0 0.0
        %566 = vmatpush2.msra.mxu0 0.0
        %567 = vmatprep.subr.mxu0 0.0
        %568 = vmatpush2.msra.mxu0 0.0
        %569 = vmatprep.subr.mxu0 0.0
        %570 = vmatpush2.msra.mxu0 0.0
        %571 = vmatprep.subr.mxu0 0.0
        %572 = vmatpush2.msra.mxu0 0.0
        %573 = vmatprep.subr.mxu0 0.0
        %574 = vmatpush2.msra.mxu0 0.0
        %575 = vmatprep.subr.mxu0 0.0
        %576 = vmatpush2.msra.mxu0 0.0
        %577 = vmatprep.subr.mxu0 0.0
        %578 = vmatpush2.msra.mxu0 0.0
        %579 = vmatprep.subr.mxu0 0.0
        %580 = vmatpush2.msra.mxu0 0.0
        %581 = vmatprep.subr.mxu0 0.0
        %582 = vmatpush2.msra.mxu0 0.0
        %583 = vmatprep.mubr.f32.mxu0 0.0
        %584 = vmatmul.mubr.f32.gmra.mxu0 %v517
        %v585 = vpop.f32.mrf.mxu0
        %v586 = vadd.f32 0.0, %v585
        %v587 = vpop.f32.mrf.mxu0
        %588 = vdwg.mxu0
        %v590 = vsel %vm515, %v513, 0
        %592 = vmatprep.subr.mxu0 0.0
        %593 = vmatpush1.msra.mxu0 0.0
        %594 = vmatprep.subr.mxu0 0.0
        %595 = vmatpush1.msra.mxu0 0.0
        %596 = vmatprep.subr.mxu0 0.0
        %597 = vmatpush1.msra.mxu0 0.0
        %598 = vmatprep.subr.mxu0 0.0
        %599 = vmatpush1.msra.mxu0 0.0
        %600 = vmatprep.subr.mxu0 0.0
        %601 = vmatpush1.msra.mxu0 0.0
        %602 = vmatprep.subr.mxu0 0.0
        %603 = vmatpush1.msra.mxu0 0.0
        %604 = vmatprep.subr.mxu0 0.0
        %605 = vmatpush1.msra.mxu0 0.0
        %606 = vmatprep.subr.mxu0 0.0
        %607 = vmatpush1.msra.mxu0 0.0
        %608 = vmatprep.subr.mxu0 0.0
        %609 = vmatpush1.msra.mxu0 0.0
        %610 = vmatprep.subr.mxu0 0.0
        %611 = vmatpush1.msra.mxu0 0.0
        %612 = vmatprep.subr.mxu0 0.0
        %613 = vmatpush1.msra.mxu0 0.0
        %614 = vmatprep.subr.mxu0 0.0
        %615 = vmatpush1.msra.mxu0 0.0
        %616 = vmatprep.subr.mxu0 0.0
        %617 = vmatpush1.msra.mxu0 0.0
        %618 = vmatprep.subr.mxu0 0.0
        %619 = vmatpush1.msra.mxu0 0.0
        %620 = vmatprep.subr.mxu0 0.0
        %621 = vmatpush1.msra.mxu0 0.0
        %622 = vmatprep.subr.mxu0 0.0
        %623 = vmatpush1.msra.mxu0 %v506
        %624 = vmatprep.subr.mxu0 0.0
        %625 = vmatpush2.msra.mxu0 0.0
        %626 = vmatprep.subr.mxu0 0.0
        %627 = vmatpush2.msra.mxu0 0.0
        %628 = vmatprep.subr.mxu0 0.0
        %629 = vmatpush2.msra.mxu0 0.0
        %630 = vmatprep.subr.mxu0 0.0
        %631 = vmatpush2.msra.mxu0 0.0
        %632 = vmatprep.subr.mxu0 0.0
        %633 = vmatpush2.msra.mxu0 0.0
        %634 = vmatprep.subr.mxu0 0.0
        %635 = vmatpush2.msra.mxu0 0.0
        %636 = vmatprep.subr.mxu0 0.0
        %637 = vmatpush2.msra.mxu0 0.0
        %638 = vmatprep.subr.mxu0 0.0
        %639 = vmatpush2.msra.mxu0 0.0
        %640 = vmatprep.subr.mxu0 0.0
        %641 = vmatpush2.msra.mxu0 0.0
        %642 = vmatprep.subr.mxu0 0.0
        %643 = vmatpush2.msra.mxu0 0.0
        %644 = vmatprep.subr.mxu0 0.0
        %645 = vmatpush2.msra.mxu0 0.0
        %646 = vmatprep.subr.mxu0 0.0
        %647 = vmatpush2.msra.mxu0 0.0
        %648 = vmatprep.subr.mxu0 0.0
        %649 = vmatpush2.msra.mxu0 0.0
        %650 = vmatprep.subr.mxu0 0.0
        %651 = vmatpush2.msra.mxu0 0.0
        %652 = vmatprep.subr.mxu0 0.0
        %653 = vmatpush2.msra.mxu0 0.0
        %654 = vmatprep.subr.mxu0 0.0
        %655 = vmatpush2.msra.mxu0 0.0
        %656 = vmatprep.mubr.f32.mxu0 0.0
        %657 = vmatmul.mubr.f32.gmra.mxu0 %v590
        %v658 = vpop.f32.mrf.mxu0
        %v659 = vadd.f32 %v586, %v658
        %v660 = vpop.f32.mrf.mxu0
        %661 = vdwg.mxu0
        %v662 = vld [vmem:[#allocation8] sm:$0x3f]
        %v664 = vsel %vm515, %v662, 0
        %666 = vmatprep.subr.mxu0 0.0
        %667 = vmatpush1.msra.mxu0 0.0
        %668 = vmatprep.subr.mxu0 0.0
        %669 = vmatpush1.msra.mxu0 0.0
        %670 = vmatprep.subr.mxu0 0.0
        %671 = vmatpush1.msra.mxu0 0.0
        %672 = vmatprep.subr.mxu0 0.0
        %673 = vmatpush1.msra.mxu0 0.0
        %674 = vmatprep.subr.mxu0 0.0
        %675 = vmatpush1.msra.mxu0 0.0
        %676 = vmatprep.subr.mxu0 0.0
        %677 = vmatpush1.msra.mxu0 0.0
        %678 = vmatprep.subr.mxu0 0.0
        %679 = vmatpush1.msra.mxu0 0.0
        %680 = vmatprep.subr.mxu0 0.0
        %681 = vmatpush1.msra.mxu0 0.0
        %682 = vmatprep.subr.mxu0 0.0
        %683 = vmatpush1.msra.mxu0 0.0
        %684 = vmatprep.subr.mxu0 0.0
        %685 = vmatpush1.msra.mxu0 0.0
        %686 = vmatprep.subr.mxu0 0.0
        %687 = vmatpush1.msra.mxu0 0.0
        %688 = vmatprep.subr.mxu0 0.0
        %689 = vmatpush1.msra.mxu0 0.0
        %690 = vmatprep.subr.mxu0 0.0
        %691 = vmatpush1.msra.mxu0 0.0
        %692 = vmatprep.subr.mxu0 0.0
        %693 = vmatpush1.msra.mxu0 0.0
        %694 = vmatprep.subr.mxu0 0.0
        %695 = vmatpush1.msra.mxu0 0.0
        %696 = vmatprep.subr.mxu0 0.0
        %697 = vmatpush1.msra.mxu0 %v512
        %698 = vmatprep.subr.mxu0 0.0
        %699 = vmatpush2.msra.mxu0 0.0
        %700 = vmatprep.subr.mxu0 0.0
        %701 = vmatpush2.msra.mxu0 0.0
        %702 = vmatprep.subr.mxu0 0.0
        %703 = vmatpush2.msra.mxu0 0.0
        %704 = vmatprep.subr.mxu0 0.0
        %705 = vmatpush2.msra.mxu0 0.0
        %706 = vmatprep.subr.mxu0 0.0
        %707 = vmatpush2.msra.mxu0 0.0
        %708 = vmatprep.subr.mxu0 0.0
        %709 = vmatpush2.msra.mxu0 0.0
        %710 = vmatprep.subr.mxu0 0.0
        %711 = vmatpush2.msra.mxu0 0.0
        %712 = vmatprep.subr.mxu0 0.0
        %713 = vmatpush2.msra.mxu0 0.0
        %714 = vmatprep.subr.mxu0 0.0
        %715 = vmatpush2.msra.mxu0 0.0
        %716 = vmatprep.subr.mxu0 0.0
        %717 = vmatpush2.msra.mxu0 0.0
        %718 = vmatprep.subr.mxu0 0.0
        %719 = vmatpush2.msra.mxu0 0.0
        %720 = vmatprep.subr.mxu0 0.0
        %721 = vmatpush2.msra.mxu0 0.0
        %722 = vmatprep.subr.mxu0 0.0
        %723 = vmatpush2.msra.mxu0 0.0
        %724 = vmatprep.subr.mxu0 0.0
        %725 = vmatpush2.msra.mxu0 0.0
        %726 = vmatprep.subr.mxu0 0.0
        %727 = vmatpush2.msra.mxu0 0.0
        %728 = vmatprep.subr.mxu0 0.0
        %729 = vmatpush2.msra.mxu0 0.0
        %730 = vmatprep.mubr.f32.mxu0 0.0
        %731 = vmatmul.mubr.f32.gmra.mxu0 %v664
        %v732 = vpop.f32.mrf.mxu0
        %v733 = vadd.f32 0.0, %v732
        %v734 = vpop.f32.mrf.mxu0
        %735 = vdwg.mxu0
        %v736 = vadd.f32 %v659, %v733
        %v737 = vld [vmem:[%s6] sm:$0x3f]
        %v738 = vadd.f32 %v736, %v737
        %v739 = vmax.f32 %v738, 0.0
        %v740 = vld [vmem:[#allocation10] sm:$0x3f]
        %v741 = vld [vmem:[%s8] sm:$0x3f]
        %vm742 = vcmask 48128
        %v744 = vsel %vm742, %v740, 0
        %vm746 = vcmask 1045504
        %v748 = vsel %vm746, %v739, 0
        %750 = vmatprep.subr.mxu0 0.0
        %751 = vmatpush1.msra.mxu0 0.0
        %752 = vmatprep.subr.mxu0 0.0
        %753 = vmatpush1.msra.mxu0 0.0
        %754 = vmatprep.subr.mxu0 0.0
        %755 = vmatpush1.msra.mxu0 0.0
        %756 = vmatprep.subr.mxu0 0.0
        %757 = vmatpush1.msra.mxu0 0.0
        %758 = vmatprep.subr.mxu0 0.0
        %759 = vmatpush1.msra.mxu0 0.0
        %760 = vmatprep.subr.mxu0 0.0
        %761 = vmatpush1.msra.mxu0 0.0
        %762 = vmatprep.subr.mxu0 0.0
        %763 = vmatpush1.msra.mxu0 0.0
        %764 = vmatprep.subr.mxu0 0.0
        %765 = vmatpush1.msra.mxu0 0.0
        %766 = vmatprep.subr.mxu0 0.0
        %767 = vmatpush1.msra.mxu0 0.0
        %768 = vmatprep.subr.mxu0 0.0
        %769 = vmatpush1.msra.mxu0 0.0
        %770 = vmatprep.subr.mxu0 0.0
        %771 = vmatpush1.msra.mxu0 0.0
        %772 = vmatprep.subr.mxu0 0.0
        %773 = vmatpush1.msra.mxu0 0.0
        %774 = vmatprep.subr.mxu0 0.0
        %775 = vmatpush1.msra.mxu0 0.0
        %776 = vmatprep.subr.mxu0 0.0
        %777 = vmatpush1.msra.mxu0 0.0
        %778 = vmatprep.subr.mxu0 0.0
        %779 = vmatpush1.msra.mxu0 0.0
        %780 = vmatprep.subr.mxu0 0.0
        %781 = vmatpush1.msra.mxu0 %v748
        %782 = vmatprep.subr.mxu0 0.0
        %783 = vmatpush2.msra.mxu0 0.0
        %784 = vmatprep.subr.mxu0 0.0
        %785 = vmatpush2.msra.mxu0 0.0
        %786 = vmatprep.subr.mxu0 0.0
        %787 = vmatpush2.msra.mxu0 0.0
        %788 = vmatprep.subr.mxu0 0.0
        %789 = vmatpush2.msra.mxu0 0.0
        %790 = vmatprep.subr.mxu0 0.0
        %791 = vmatpush2.msra.mxu0 0.0
        %792 = vmatprep.subr.mxu0 0.0
        %793 = vmatpush2.msra.mxu0 0.0
        %794 = vmatprep.subr.mxu0 0.0
        %795 = vmatpush2.msra.mxu0 0.0
        %796 = vmatprep.subr.mxu0 0.0
        %797 = vmatpush2.msra.mxu0 0.0
        %798 = vmatprep.subr.mxu0 0.0
        %799 = vmatpush2.msra.mxu0 0.0
        %800 = vmatprep.subr.mxu0 0.0
        %801 = vmatpush2.msra.mxu0 0.0
        %802 = vmatprep.subr.mxu0 0.0
        %803 = vmatpush2.msra.mxu0 0.0
        %804 = vmatprep.subr.mxu0 0.0
        %805 = vmatpush2.msra.mxu0 0.0
        %806 = vmatprep.subr.mxu0 0.0
        %807 = vmatpush2.msra.mxu0 0.0
        %808 = vmatprep.subr.mxu0 0.0
        %809 = vmatpush2.msra.mxu0 0.0
        %810 = vmatprep.subr.mxu0 0.0
        %811 = vmatpush2.msra.mxu0 0.0
        %812 = vmatprep.subr.mxu0 0.0
        %813 = vmatpush2.msra.mxu0 0.0
        %814 = vmatprep.mubr.f32.mxu0 0.0
        %815 = vmatmul.mubr.f32.gmra.mxu0 %v744
        %v816 = vpop.f32.mrf.mxu0
        %v817 = vadd.f32 %v741, %v816
        %v818 = vpop.f32.mrf.mxu0
        %819 = vdwg.mxu0
        %v820 = vmax.f32 %v817, 0.0
        %v821 = vld [vmem:[%s9] sm:$0xff]
        %v822 = vld [vmem:[%s9 + $0x8] sm:$0xff]
        %v823 = vld [vmem:[%s9 + $0x10] sm:$0xff]
        %v824 = vld [vmem:[%s10] sm:$0xff]
        %v825 = vld [vmem:[%s10 + $0x8] sm:$0xff]
        %v826 = vld [vmem:[%s10 + $0x10] sm:$0xff]
        %v828 = vsel %vm742, %v821, 0
        %v831 = vsel %vm742, %v822, 0
        %v834 = vsel %vm742, %v823, 0
        %v837 = vsel %vm746, %v820, 0
        %839 = vmatprep.subr.mxu0 0.0
        %840 = vmatpush1.msra.mxu0 0.0
        %841 = vmatprep.subr.mxu0 0.0
        %842 = vmatpush1.msra.mxu0 0.0
        %843 = vmatprep.subr.mxu0 0.0
        %844 = vmatpush1.msra.mxu0 0.0
        %845 = vmatprep.subr.mxu0 0.0
        %846 = vmatpush1.msra.mxu0 0.0
        %847 = vmatprep.subr.mxu0 0.0
        %848 = vmatpush1.msra.mxu0 0.0
        %849 = vmatprep.subr.mxu0 0.0
        %850 = vmatpush1.msra.mxu0 0.0
        %851 = vmatprep.subr.mxu0 0.0
        %852 = vmatpush1.msra.mxu0 0.0
        %853 = vmatprep.subr.mxu0 0.0
        %854 = vmatpush1.msra.mxu0 0.0
        %855 = vmatprep.subr.mxu0 0.0
        %856 = vmatpush1.msra.mxu0 0.0
        %857 = vmatprep.subr.mxu0 0.0
        %858 = vmatpush1.msra.mxu0 0.0
        %859 = vmatprep.subr.mxu0 0.0
        %860 = vmatpush1.msra.mxu0 0.0
        %861 = vmatprep.subr.mxu0 0.0
        %862 = vmatpush1.msra.mxu0 0.0
        %863 = vmatprep.subr.mxu0 0.0
        %864 = vmatpush1.msra.mxu0 0.0
        %865 = vmatprep.subr.mxu0 0.0
        %866 = vmatpush1.msra.mxu0 0.0
        %867 = vmatprep.subr.mxu0 0.0
        %868 = vmatpush1.msra.mxu0 0.0
        %869 = vmatprep.subr.mxu0 0.0
        %870 = vmatpush1.msra.mxu0 %v837
        %871 = vmatprep.subr.mxu0 0.0
        %872 = vmatpush2.msra.mxu0 0.0
        %873 = vmatprep.subr.mxu0 0.0
        %874 = vmatpush2.msra.mxu0 0.0
        %875 = vmatprep.subr.mxu0 0.0
        %876 = vmatpush2.msra.mxu0 0.0
        %877 = vmatprep.subr.mxu0 0.0
        %878 = vmatpush2.msra.mxu0 0.0
        %879 = vmatprep.subr.mxu0 0.0
        %880 = vmatpush2.msra.mxu0 0.0
        %881 = vmatprep.subr.mxu0 0.0
        %882 = vmatpush2.msra.mxu0 0.0
        %883 = vmatprep.subr.mxu0 0.0
        %884 = vmatpush2.msra.mxu0 0.0
        %885 = vmatprep.subr.mxu0 0.0
        %886 = vmatpush2.msra.mxu0 0.0
        %887 = vmatprep.subr.mxu0 0.0
        %888 = vmatpush2.msra.mxu0 0.0
        %889 = vmatprep.subr.mxu0 0.0
        %890 = vmatpush2.msra.mxu0 0.0
        %891 = vmatprep.subr.mxu0 0.0
        %892 = vmatpush2.msra.mxu0 0.0
        %893 = vmatprep.subr.mxu0 0.0
        %894 = vmatpush2.msra.mxu0 0.0
        %895 = vmatprep.subr.mxu0 0.0
        %896 = vmatpush2.msra.mxu0 0.0
        %897 = vmatprep.subr.mxu0 0.0
        %898 = vmatpush2.msra.mxu0 0.0
        %899 = vmatprep.subr.mxu0 0.0
        %900 = vmatpush2.msra.mxu0 0.0
        %901 = vmatprep.subr.mxu0 0.0
        %902 = vmatpush2.msra.mxu0 0.0
        %903 = vmatprep.mubr.f32.mxu0 0.0
        %904 = vmatmul.mubr.f32.gmra.mxu0 %v828
        %v905 = vpop.f32.mrf.mxu0
        %v906 = vadd.f32 %v824, %v905
        %v907 = vpop.f32.mrf.mxu0
        %908 = vmatprep.mubr.f32.mxu0 0.0
        %909 = vmatmul.mubr.f32.gmra.mxu0 %v831
        %v910 = vpop.f32.mrf.mxu0
        %v911 = vadd.f32 %v825, %v910
        %v912 = vpop.f32.mrf.mxu0
        %913 = vmatprep.mubr.f32.mxu0 0.0
        %914 = vmatmul.mubr.f32.gmra.mxu0 %v834
        %v915 = vpop.f32.mrf.mxu0
        %v916 = vadd.f32 %v826, %v915
        %v917 = vpop.f32.mrf.mxu0
        %918 = vdwg.mxu0
        %v919 = vxor.u32 %v906, 2147483648
        %v920 = vxor.u32 %v911, 2147483648
        %v921 = vxor.u32 %v916, 2147483648
        %v922 = vmul.f32 %v919, 1.442695
        %v923 = vpow.pop %v922
        %v924 = vmul.f32 %v920, 1.442695
        %v925 = vpow.pop %v924
        %v926 = vmul.f32 %v921, 1.442695
        %v927 = vpow.pop %v926
        %v928 = vadd.f32 %v923, 1.0
        %v929 = vadd.f32 %v925, 1.0
        %v930 = vadd.f32 %v927, 1.0
        %v931 = vrcp.pop %v928
        %v932 = vmul.f32 1.0, %v931
        %v933 = vrcp.pop %v929
        %v934 = vmul.f32 1.0, %v933
        %v935 = vrcp.pop %v930
        %v936 = vmul.f32 1.0, %v935
        %938 = vset.pattern.permute.xlu0 0
        %939 = vperm.xlu0 %938, %v932
        %v940 = vpop.permute.xlu0 %939
        %v942 = vmul.f32 %v498, %v940
        %v943 = vmul.f32 %v499, %v940
        %945 = vset.pattern.permute.xlu0 0
        %946 = vperm.xlu0 %945, %v934
        %v947 = vpop.permute.xlu0 %946
        %v949 = vmul.f32 %v500, %v947
        %v950 = vmul.f32 %v501, %v947
        %v951 = vadd.f32 %v942, %v949
        %v952 = vadd.f32 %v943, %v950
        %954 = vset.pattern.permute.xlu0 0
        %955 = vperm.xlu0 %954, %v936
        %v956 = vpop.permute.xlu0 %955
        %v958 = vmul.f32 %v502, %v956
        %v959 = vmul.f32 %v503, %v956
        %v960 = vadd.f32 %v951, %v958
        %v961 = vadd.f32 %v952, %v959
        %962 = vst [vmem:[%s492] sm:$0xff] %v960
        %963 = vst [vmem:[%s492 + $0x8] sm:$0xff] %v961
        %s964 = sand.u32 %s286, 1
        %s965 = scalar_lea.sflag [#allocation4], %s964
        %s966 = sand.u32 %s286, 1
        %s967 = smul.addr %s966, 16
        %s968 = scalar_lea.vmem [#allocation11], %s967
        // Predicated region
        $region85: #{tpu_custom_call.1} parent=63 // pred_check
          %p969 = pneg %p296
        $region86: #{tpu_custom_call.1} parent=63 // pred_check_branch
          %971 = sbr.rel (%p969) target = $region88
        $region87: #{tpu_custom_call.1} parent=63 // pred_region
          %s973 = ssub.s32 256, 256
          %974 = vsyncadd %s965, %s973
          %s975 = smul.addr %s32, 2
          %s976 = smul.addr %s975, 128
          %s977 = scalar_lea.hbm %s11, %s976
          %s979 = sshll.u32 %s968, 4
          %s980 = int_to_ptr.vmem [resolvable:$true] %s979
          %982 = dma.vmem_to_hbm [thread:$0]  %s980, 256, %s977, %s965
        $region88: #{tpu_custom_call.1} parent=63 // pred_fallthru
          _
      $region64: #{tpu_custom_call.1} parent=5 // pred_fallthru
        _
      %p983 = scmp.le.s32.totalorder 2, %s27
      // Predicated region
      $region89: #{tpu_custom_call.1} parent=5 // pred_check
        %p984 = pneg %p983
      $region90: #{tpu_custom_call.1} parent=5 // pred_check_branch
        %986 = sbr.rel (%p984) target = $region92
      $region91: #{tpu_custom_call.1} parent=5 // pred_region
        %s987 = ssub.s32 %s27, 2
        // Predicated region
        $region93: #{tpu_custom_call.1} parent=91 // pred_check
          %p988 = pneg %p302
        $region94: #{tpu_custom_call.1} parent=91 // pred_check_branch
          %990 = sbr.rel (%p988) target = $region96
        $region95: #{tpu_custom_call.1} parent=91 // pred_region
          %s991 = sand.u32 %s287, 1
          %s992 = scalar_lea.sflag [#allocation4], %s991
          %s993 = sand.u32 %s287, 1
          %s994 = smul.addr %s993, 16
          %s995 = scalar_lea.vmem [#allocation11], %s994
          %996 = dma.done %s992, 256
        $region96: #{tpu_custom_call.1} parent=91 // pred_fallthru
          _
      $region92: #{tpu_custom_call.1} parent=5 // pred_fallthru
        _
    $region6: #{tpu_custom_call.1} parent=1 // loop_footer
      %s31 = sadd.s32 1, %s27
    $region7: #{tpu_custom_call.1} parent=1 // loop_footer_branch
      %26 = sbr.rel target = $region3
    $region8: #{tpu_custom_call.1} parent=1 // loop_exit
      _
    %997 = vsyncpa [#allocation3], 1
    %s998 = scalar_lea.sflag [#allocation3], 1
    %999 = vsyncpa %s998, 1
    %1000 = vsyncpa [#allocation6], 1
    %s1001 = scalar_lea.sflag [#allocation6], 1
    %1002 = vsyncpa %s1001, 1
    %1003 = vsyncpa [#allocation9], 1
    %1004 = vsyncpa [#allocation4], 1
    %s1005 = scalar_lea.sflag [#allocation4], 1
    %1006 = vsyncpa %s1005, 1

</llo_original>
